<compile_context>
chip_gen: v5e
topology: v5e:2x2
jax: 0.10.0
libtpu: 0.0.40
codegen_flags: <defaults>
</compile_context>

<pallas_src>
import functools
import itertools

import jax
import jax.numpy as jnp
from jax.experimental import pallas as pl
from jax.experimental.pallas import tpu as pltpu


# ----------------------------------------------------------------------------
# helpers
# ----------------------------------------------------------------------------
def _round_up(x, m):
    return ((x + m - 1) // m) * m


@functools.lru_cache(maxsize=1)
def _vmem_capacity_bytes():
    try:
        return int(pltpu.get_tpu_info().vmem_capacity_bytes)
    except Exception:
        return 64 * 1024 * 1024  # conservative fallback, safe on every generation


def _choose_block_m(n, vmem_cap):
    """Batch-tile rows: MXU-friendly, VMEM-aware, enough grid steps to pipeline."""
    if n <= 256:
        # Tiny batch: single tile rounded up to the 8-row sublane granule.
        return _round_up(max(n, 8), 8)
    small_vmem = vmem_cap <= 64 * 1024 * 1024  # v7x-class: 64 MiB VMEM, 2 TCs
    cap = 256 if small_vmem else 512           # 256-aligned M pushes for 2x256^2 MXU
    min_steps = 8 if small_vmem else 4         # enough steps for DMA/compute overlap
    bm = min(cap, _round_up(pl.cdiv(n, min_steps), 128))
    return max(bm, 128)


# ----------------------------------------------------------------------------
# Pallas kernel: fused conditional dense feedforward net
#   h = relu(first_layer); h = relu(h @ W + b); ...; out = h @ W_last + b_last
# ----------------------------------------------------------------------------
def _make_mlp_kernel(n_layers, has_ctx):
    def kernel(*refs):
        o_ref = refs[-1]
        if has_ctx:
            ctx_ref, x_ref = refs[0], refs[1]
            wb = refs[2:-1]  # w0_ctx, w0_x, b0, w1, b1, ...
            ctx = ctx_ref[...].astype(jnp.bfloat16)
            x = x_ref[...].astype(jnp.bfloat16)
            # Split first-layer dot == cat([context, x], -1) @ W0 without the concat.
            # TODO(synk): merge these two dots into a single K=C+D push via an
            # in-kernel bf16 concat once unaligned lane-concat lowering is verified
            # on all target generations.
            h = (jnp.dot(ctx, wb[0][...], preferred_element_type=jnp.float32)
                 + jnp.dot(x, wb[1][...], preferred_element_type=jnp.float32)
                 + wb[2][...])
            rest = wb[3:]
        else:
            # Broadcast-context path: context already folded into the bias.
            x_ref = refs[0]
            wb = refs[1:-1]  # w0_x, b0_folded, w1, b1, ...
            x = x_ref[...].astype(jnp.bfloat16)
            h = jnp.dot(x, wb[0][...], preferred_element_type=jnp.float32) + wb[1][...]
            rest = wb[2:]

        for l in range(n_layers - 1):
            h = jnp.maximum(h, 0.0)  # ReLU on hidden layers only (f32 on VPU)
            h = (jnp.dot(h.astype(jnp.bfloat16), rest[2 * l][...],
                         preferred_element_type=jnp.float32)
                 + rest[2 * l + 1][...])

        o_ref[...] = h.astype(o_ref.dtype)

    return kernel


def _mlp_pallas(ctx2d, x2d, wb, *, single_buffer, vmem_cap):
    """Run the fused conditional MLP on 2-D inputs; returns lane-padded output."""
    has_ctx = ctx2d is not None
    N, D = x2d.shape
    C = ctx2d.shape[1] if has_ctx else 0
    out_pad = int(wb[-1].shape[-1])
    n_layers = (len(wb) - (1 if has_ctx else 0)) // 2

    block_m = _choose_block_m(N, vmem_cap)
    grid = (pl.cdiv(N, block_m),)

    def const_spec(arr):
        # Constant-index weights/biases: single-buffer them (no re-DMA is ever
        # needed), halving their resident VMEM footprint.
        if single_buffer:
            return pl.BlockSpec(arr.shape, lambda i: (0, 0),
                                pipeline_mode=pl.Buffered(1))
        return pl.BlockSpec(arr.shape, lambda i: (0, 0))

    in_specs = []
    inputs = []
    if has_ctx:
        in_specs.append(pl.BlockSpec((block_m, C), lambda i: (i, 0)))
        inputs.append(ctx2d)
    in_specs.append(pl.BlockSpec((block_m, D), lambda i: (i, 0)))
    inputs.append(x2d)
    in_specs += [const_spec(a) for a in wb]
    inputs += list(wb)
    out_spec = pl.BlockSpec((block_m, out_pad), lambda i: (i, 0))

    # Advisory cost estimate (helps XLA schedule around the custom call).
    if has_ctx:
        w_mats = [wb[0], wb[1]] + [wb[3 + 2 * l] for l in range(n_layers - 1)]
    else:
        w_mats = [wb[2 * l] for l in range(n_layers)]
    flops = 2 * N * sum(int(w.shape[0]) * int(w.shape[1]) for w in w_mats)
    bytes_accessed = (int(x2d.size) * x2d.dtype.itemsize
                      + (int(ctx2d.size) * ctx2d.dtype.itemsize if has_ctx else 0)
                      + sum(int(a.size) * a.dtype.itemsize for a in wb)
                      + N * out_pad * x2d.dtype.itemsize)
    cost = pl.CostEstimate(flops=int(flops), transcendentals=0,
                           bytes_accessed=int(bytes_accessed))

    # VMEM budget: resident weights (1x if single-buffered), double-buffered
    # input/output tiles, intermediate-activation headroom; clamped to 85% of
    # this chip's physical VMEM.
    weight_bytes = sum(int(a.size) * a.dtype.itemsize for a in wb)
    wbuf = 1 if single_buffer else 2
    io_bytes = 2 * block_m * (C + D) * 4 + 2 * block_m * out_pad * 4
    hidden_max = max([int(a.shape[-1]) for a in wb] + [C + D])
    act_bytes = 4 * block_m * hidden_max * 4
    vmem_needed = wbuf * weight_bytes + io_bytes + act_bytes
    vmem_limit = min(int(0.85 * vmem_cap),
                     max(32 * 1024 * 1024, int(1.5 * vmem_needed)))
    # TODO(synk): for very large hidden_dims (bf16 weight > ~20 MiB on v7x),
    # add an output-column grid axis ("arbitrary") with an f32 accumulator
    # scratch instead of keeping every weight fully VMEM-resident.

    out = pl.pallas_call(
        _make_mlp_kernel(n_layers, has_ctx),
        out_shape=jax.ShapeDtypeStruct((N, out_pad), x2d.dtype),
        grid_spec=pltpu.PrefetchScalarGridSpec(
            num_scalar_prefetch=0,
            grid=grid,
            in_specs=in_specs,
            out_specs=out_spec,
        ),
        compiler_params=pltpu.CompilerParams(
            dimension_semantics=("parallel",),
            vmem_limit_bytes=vmem_limit,
        ),
        cost_estimate=cost,
    )(*inputs)

    return out  # lane-padded; caller slices parameters directly from it


@functools.partial(jax.jit, static_argnames=("fold", "single_buffer", "vmem_cap"))
def _forward_2d(ctx2d, x2d, params, fold, single_buffer, vmem_cap):
    """Jit-compiled 2-D forward.  ctx2d is (1, C) when fold else (N, C)."""
    if fold:
        # Shared (broadcast) context: fold it into the first-layer bias in f32.
        b0 = ctx2d.astype(jnp.float32) @ params["w0_ctx_f32"] + params["b0"]
        wb = (params["w0_x"], b0) + params["rest"]
        return _mlp_pallas(None, x2d, wb,
                           single_buffer=single_buffer, vmem_cap=vmem_cap)
    wb = (params["w0_ctx"], params["w0_x"], params["b0"]) + params["rest"]
    return _mlp_pallas(ctx2d, x2d, wb,
                       single_buffer=single_buffer, vmem_cap=vmem_cap)


# ----------------------------------------------------------------------------
# ConditionalDenseNN: parameter init + forward (mirrors the PyTorch module)
# ----------------------------------------------------------------------------
class ConditionalDenseNN:
    def __init__(self, input_dim, context_dim, hidden_dims, param_dims=(1, 1), key=None):
        assert len(hidden_dims) >= 1
        self.input_dim = input_dim
        self.context_dim = context_dim
        self.hidden_dims = list(hidden_dims)
        self.param_dims = list(param_dims)
        self.count_params = len(self.param_dims)
        self.output_multiplier = sum(self.param_dims)

        ends = list(itertools.accumulate(self.param_dims))
        starts = [0] + ends[:-1]
        self.param_slices = [slice(s, e) for s, e in zip(starts, ends)]

        # Layer sizes exactly as in the PyTorch module.
        sizes = [input_dim + context_dim] + self.hidden_dims + [self.output_multiplier]

        # Deterministic init mimicking torch.nn.Linear defaults
        # (uniform in [-1/sqrt(fan_in), 1/sqrt(fan_in)]).  Master weights f32.
        if key is None:
            key = jax.random.PRNGKey(0)
        self.weights, self.biases = [], []
        for fan_in, fan_out in zip(sizes[:-1], sizes[1:]):
            key, kw, kb = jax.random.split(key, 3)
            bound = 1.0 / float(fan_in) ** 0.5
            # Stored as (in, out) so the kernel computes x @ W (== x @ W_torch.T).
            w = jax.random.uniform(kw, (fan_in, fan_out), jnp.float32, -bound, bound)
            b = jax.random.uniform(kb, (fan_out,), jnp.float32, -bound, bound)
            self.weights.append(w)
            self.biases.append(b)

        # ---- one-time kernel-operand prep (bf16 cast, first-layer split,
        # ---- lane-padded last layer) -- cached, not rebuilt per forward.
        C = context_dim
        out_dim = self.output_multiplier
        out_pad = _round_up(out_dim, 128)  # lane-dense unmasked output stores
        self._out_pad = out_pad

        w0 = self.weights[0]
        rest = []
        last = len(self.weights) - 1
        for li, (w, b) in enumerate(zip(self.weights[1:], self.biases[1:]), start=1):
            wc = w.astype(jnp.bfloat16)
            bc = b.reshape(1, -1).astype(jnp.float32)
            if li == last and out_pad != out_dim:
                wc = jnp.pad(wc, ((0, 0), (0, out_pad - out_dim)))
                bc = jnp.pad(bc, ((0, 0), (0, out_pad - out_dim)))
            rest += [wc, bc]

        self._params = dict(
            w0_ctx=w0[:C].astype(jnp.bfloat16),   # rows multiplying context
            w0_x=w0[C:].astype(jnp.bfloat16),     # rows multiplying x
            w0_ctx_f32=w0[:C],                    # f32 copy for bias folding
            b0=self.biases[0].reshape(1, -1).astype(jnp.float32),
            rest=tuple(rest),
        )
        self._vmem_cap = _vmem_capacity_bytes()
        self._single_buffer = None  # resolved on first call (pl.Buffered(1) probe)

    # internal: run jitted forward with a one-shot Buffered(1) fallback probe
    def _run(self, ctx2d, x2d, fold):
        if self._single_buffer is None:
            try:
                r = _forward_2d(ctx2d, x2d, self._params, fold=fold,
                                single_buffer=True, vmem_cap=self._vmem_cap)
                r = jax.block_until_ready(r)
                self._single_buffer = True
                return r
            except Exception:
                # This JAX/Mosaic build rejected single-buffered pipeline_mode;
                # fall back to the default double-buffered constant specs.
                self._single_buffer = False
        return _forward_2d(ctx2d, x2d, self._params, fold=fold,
                           single_buffer=self._single_buffer,
                           vmem_cap=self._vmem_cap)

    def __call__(self, x, context):
        C = self.context_dim
        batch_shape = x.shape[:-1]
        x2d = x.reshape(-1, self.input_dim)

        # context.expand(x.size()[:-1] + (context_dim,)):
        #  * if every context batch dim is 1 (the common Pyro usage), fold the
        #    context into the first-layer bias -- no N x C materialization.
        #  * otherwise pass the per-sample context; the kernel does the split
        #    first-layer dot (no cat([context, x]) is ever materialized).
        fold = all(int(d) == 1 for d in context.shape[:-1])
        if fold:
            ctx2d = context.reshape(1, C)
        else:
            ctx2d = jnp.broadcast_to(
                context, batch_shape + (C,)).reshape(-1, C)

        out = self._run(ctx2d, x2d, fold)          # (N, out_pad), lane-padded
        out = out.reshape(batch_shape + (self._out_pad,))

        # Fused un-pad + parameter split: slice directly from the padded output.
        if self.output_multiplier == 1:
            return out[..., :1]
        if self.count_params == 1:
            return out[..., :self.output_multiplier]
        return tuple(out[..., s] for s in self.param_slices)


# ----------------------------------------------------------------------------
# Pure-JAX f32 reference for correctness checking
# ----------------------------------------------------------------------------
def _ref_forward(net, x, context):
    context = jnp.broadcast_to(context, x.shape[:-1] + (context.shape[-1],))
    h = jnp.concatenate([context, x], axis=-1)
    for l, (w, b) in enumerate(zip(net.weights, net.biases)):
        h = h @ w + b
        if l < len(net.weights) - 1:
            h = jnp.maximum(h, 0.0)
    h = h.reshape(x.shape[:-1] + (net.output_multiplier,))
    return tuple(h[..., s] for s in net.param_slices)


if __name__ == "__main__":
    # Small shapes consistent with the module's docstring example.
    input_dim = 10
    context_dim = 5
    hidden_dims = [32, 32]
    param_dims = [1, input_dim, input_dim]
    batch = 16

    key = jax.random.PRNGKey(0)
    kx, kz, kp = jax.random.split(key, 3)
    x = jax.random.normal(kx, (batch, input_dim), jnp.float32)
    z = jax.random.normal(kz, (batch, context_dim), jnp.float32)       # per-sample context
    z_shared = jax.random.normal(kz, (1, context_dim), jnp.float32)    # broadcast context

    net = ConditionalDenseNN(input_dim, context_dim, hidden_dims, param_dims, key=kp)

    outs = jax.block_until_ready(net(x, z))               # split-dot path
    outs_shared = jax.block_until_ready(net(x, z_shared))  # bias-fold path

    refs = _ref_forward(net, x, z)
    refs_shared = _ref_forward(net, x, z_shared)

    # Kernel uses bf16 MXU operands with f32 accumulation -> loosened tolerance
    # vs the pure-f32 reference.
    for got, ref in ((outs, refs), (outs_shared, refs_shared)):
        for o, r, p in zip(got, ref, param_dims):
            assert o.shape == (batch, p), (o.shape, p)
            assert jnp.allclose(o, r, atol=5e-2, rtol=5e-2), "mismatch vs reference"

    print("KERNEL_OK")
</pallas_src>

<mosaic_0001>
module attributes {stable_mosaic.version = 11 : i64} {
  func.func @kernel(%arg0: i32, %arg1: memref<16x5xf32, #tpu.memory_space<vmem>>, %arg2: memref<16x10xf32, #tpu.memory_space<vmem>>, %arg3: memref<5x32xbf16, #tpu.memory_space<vmem>>, %arg4: memref<10x32xbf16, #tpu.memory_space<vmem>>, %arg5: memref<1x32xf32, #tpu.memory_space<vmem>>, %arg6: memref<32x32xbf16, #tpu.memory_space<vmem>>, %arg7: memref<1x32xf32, #tpu.memory_space<vmem>>, %arg8: memref<32x128xbf16, #tpu.memory_space<vmem>>, %arg9: memref<1x128xf32, #tpu.memory_space<vmem>>, %arg10: memref<16x128xf32, #tpu.memory_space<vmem>>) attributes {dimension_semantics = [#tpu.dimension_semantics<parallel>], iteration_bounds = array<i64: 1>, scalar_prefetch = 0 : i64, scratch_operands = 0 : i64, tpu.core_type = #tpu.core_type<tc>, window_params = [{transform_indices = @transform_0, window_bounds = array<i64: 16, 5>}, {transform_indices = @transform_1, window_bounds = array<i64: 16, 10>}, {pipeline_mode = #tpu.pipeline_mode<synchronous>, transform_indices = @transform_2, window_bounds = array<i64: 5, 32>}, {pipeline_mode = #tpu.pipeline_mode<synchronous>, transform_indices = @transform_3, window_bounds = array<i64: 10, 32>}, {pipeline_mode = #tpu.pipeline_mode<synchronous>, transform_indices = @transform_4, window_bounds = array<i64: 1, 32>}, {pipeline_mode = #tpu.pipeline_mode<synchronous>, transform_indices = @transform_5, window_bounds = array<i64: 32, 32>}, {pipeline_mode = #tpu.pipeline_mode<synchronous>, transform_indices = @transform_6, window_bounds = array<i64: 1, 32>}, {pipeline_mode = #tpu.pipeline_mode<synchronous>, transform_indices = @transform_7, window_bounds = array<i64: 32, 128>}, {pipeline_mode = #tpu.pipeline_mode<synchronous>, transform_indices = @transform_8, window_bounds = array<i64: 1, 128>}, {transform_indices = @transform_9, window_bounds = array<i64: 16, 128>}]} {
    %c0 = arith.constant 0 : index
    %c0_0 = arith.constant 0 : index
    %0 = vector.load %arg1[%c0, %c0_0] : memref<16x5xf32, #tpu.memory_space<vmem>>, vector<16x5xf32>
    %1 = arith.truncf %0 : vector<16x5xf32> to vector<16x5xbf16>
    %c0_1 = arith.constant 0 : index
    %c0_2 = arith.constant 0 : index
    %2 = vector.load %arg2[%c0_1, %c0_2] : memref<16x10xf32, #tpu.memory_space<vmem>>, vector<16x10xf32>
    %3 = arith.truncf %2 : vector<16x10xf32> to vector<16x10xbf16>
    %c0_3 = arith.constant 0 : index
    %c0_4 = arith.constant 0 : index
    %4 = vector.load %arg3[%c0_3, %c0_4] : memref<5x32xbf16, #tpu.memory_space<vmem>>, vector<5x32xbf16>
    %cst = arith.constant dense<0.000000e+00> : vector<16x32xf32>
    %5 = tpu.matmul %1, %4, %cst {dimension_numbers = #tpu.dot_dimension_numbers<[1], [0], [0], [1], [0, 0, 1, 1], [], []>} : vector<16x5xbf16>, vector<5x32xbf16>, vector<16x32xf32> -> vector<16x32xf32>
    %c0_5 = arith.constant 0 : index
    %c0_6 = arith.constant 0 : index
    %6 = vector.load %arg4[%c0_5, %c0_6] : memref<10x32xbf16, #tpu.memory_space<vmem>>, vector<10x32xbf16>
    %cst_7 = arith.constant dense<0.000000e+00> : vector<16x32xf32>
    %7 = tpu.matmul %3, %6, %cst_7 {dimension_numbers = #tpu.dot_dimension_numbers<[1], [0], [0], [1], [0, 0, 1, 1], [], []>} : vector<16x10xbf16>, vector<10x32xbf16>, vector<16x32xf32> -> vector<16x32xf32>
    %8 = arith.addf %5, %7 : vector<16x32xf32>
    %c0_8 = arith.constant 0 : index
    %c0_9 = arith.constant 0 : index
    %9 = vector.load %arg5[%c0_8, %c0_9] : memref<1x32xf32, #tpu.memory_space<vmem>>, vector<1x32xf32>
    %10 = vector.broadcast %9 : vector<1x32xf32> to vector<16x32xf32>
    %11 = arith.addf %8, %10 : vector<16x32xf32>
    %cst_10 = arith.constant 0.000000e+00 : f32
    %12 = vector.broadcast %cst_10 : f32 to vector<16x32xf32>
    %13 = arith.maximumf %11, %12 : vector<16x32xf32>
    %14 = arith.truncf %13 : vector<16x32xf32> to vector<16x32xbf16>
    %c0_11 = arith.constant 0 : index
    %c0_12 = arith.constant 0 : index
    %15 = vector.load %arg6[%c0_11, %c0_12] : memref<32x32xbf16, #tpu.memory_space<vmem>>, vector<32x32xbf16>
    %cst_13 = arith.constant dense<0.000000e+00> : vector<16x32xf32>
    %16 = tpu.matmul %14, %15, %cst_13 {dimension_numbers = #tpu.dot_dimension_numbers<[1], [0], [0], [1], [0, 0, 1, 1], [], []>} : vector<16x32xbf16>, vector<32x32xbf16>, vector<16x32xf32> -> vector<16x32xf32>
    %c0_14 = arith.constant 0 : index
    %c0_15 = arith.constant 0 : index
    %17 = vector.load %arg7[%c0_14, %c0_15] : memref<1x32xf32, #tpu.memory_space<vmem>>, vector<1x32xf32>
    %18 = vector.broadcast %17 : vector<1x32xf32> to vector<16x32xf32>
    %19 = arith.addf %16, %18 : vector<16x32xf32>
    %cst_16 = arith.constant 0.000000e+00 : f32
    %20 = vector.broadcast %cst_16 : f32 to vector<16x32xf32>
    %21 = arith.maximumf %19, %20 : vector<16x32xf32>
    %22 = arith.truncf %21 : vector<16x32xf32> to vector<16x32xbf16>
    %c0_17 = arith.constant 0 : index
    %c0_18 = arith.constant 0 : index
    %23 = vector.load %arg8[%c0_17, %c0_18] : memref<32x128xbf16, #tpu.memory_space<vmem>>, vector<32x128xbf16>
    %cst_19 = arith.constant dense<0.000000e+00> : vector<16x128xf32>
    %24 = tpu.matmul %22, %23, %cst_19 {dimension_numbers = #tpu.dot_dimension_numbers<[1], [0], [0], [1], [0, 0, 1, 1], [], []>} : vector<16x32xbf16>, vector<32x128xbf16>, vector<16x128xf32> -> vector<16x128xf32>
    %c0_20 = arith.constant 0 : index
    %c0_21 = arith.constant 0 : index
    %25 = vector.load %arg9[%c0_20, %c0_21] : memref<1x128xf32, #tpu.memory_space<vmem>>, vector<1x128xf32>
    %26 = vector.broadcast %25 : vector<1x128xf32> to vector<16x128xf32>
    %27 = arith.addf %24, %26 : vector<16x128xf32>
    %c0_22 = arith.constant 0 : index
    %c0_23 = arith.constant 0 : index
    %28 = vector.load %arg10[%c0_22, %c0_23] : memref<16x128xf32, #tpu.memory_space<vmem>>, vector<16x128xf32>
    tpu.vector_store %arg10[%c0_22, %c0_23], %27 {strides = array<i32>} : memref<16x128xf32, #tpu.memory_space<vmem>>, vector<16x128xf32>,
    return
  }
  func.func @transform_0(%arg0: i32) -> (i32, i32) {
    %c0_i32 = arith.constant 0 : i32
    %c0_i32_0 = arith.constant 0 : i32
    return %arg0, %c0_i32 : i32, i32
  }
  func.func @transform_1(%arg0: i32) -> (i32, i32) {
    %c0_i32 = arith.constant 0 : i32
    %c0_i32_0 = arith.constant 0 : i32
    return %arg0, %c0_i32 : i32, i32
  }
  func.func @transform_2(%arg0: i32) -> (i32, i32) {
    %c0_i32 = arith.constant 0 : i32
    %c0_i32_0 = arith.constant 0 : i32
    %c0_i32_1 = arith.constant 0 : i32
    return %c0_i32, %c0_i32_0 : i32, i32
  }
  func.func @transform_3(%arg0: i32) -> (i32, i32) {
    %c0_i32 = arith.constant 0 : i32
    %c0_i32_0 = arith.constant 0 : i32
    %c0_i32_1 = arith.constant 0 : i32
    return %c0_i32, %c0_i32_0 : i32, i32
  }
  func.func @transform_4(%arg0: i32) -> (i32, i32) {
    %c0_i32 = arith.constant 0 : i32
    %c0_i32_0 = arith.constant 0 : i32
    %c0_i32_1 = arith.constant 0 : i32
    return %c0_i32, %c0_i32_0 : i32, i32
  }
  func.func @transform_5(%arg0: i32) -> (i32, i32) {
    %c0_i32 = arith.constant 0 : i32
    %c0_i32_0 = arith.constant 0 : i32
    %c0_i32_1 = arith.constant 0 : i32
    return %c0_i32, %c0_i32_0 : i32, i32
  }
  func.func @transform_6(%arg0: i32) -> (i32, i32) {
    %c0_i32 = arith.constant 0 : i32
    %c0_i32_0 = arith.constant 0 : i32
    %c0_i32_1 = arith.constant 0 : i32
    return %c0_i32, %c0_i32_0 : i32, i32
  }
  func.func @transform_7(%arg0: i32) -> (i32, i32) {
    %c0_i32 = arith.constant 0 : i32
    %c0_i32_0 = arith.constant 0 : i32
    %c0_i32_1 = arith.constant 0 : i32
    return %c0_i32, %c0_i32_0 : i32, i32
  }
  func.func @transform_8(%arg0: i32) -> (i32, i32) {
    %c0_i32 = arith.constant 0 : i32
    %c0_i32_0 = arith.constant 0 : i32
    %c0_i32_1 = arith.constant 0 : i32
    return %c0_i32, %c0_i32_0 : i32, i32
  }
  func.func @transform_9(%arg0: i32) -> (i32, i32) {
    %c0_i32 = arith.constant 0 : i32
    %c0_i32_0 = arith.constant 0 : i32
    return %arg0, %c0_i32 : i32, i32
  }
}

module attributes {stable_mosaic.version = 11 : i64} {
  func.func @kernel(%arg0: i32, %arg1: memref<16x5xf32, #tpu.memory_space<vmem>>, %arg2: memref<16x10xf32, #tpu.memory_space<vmem>>, %arg3: memref<5x32xbf16, #tpu.memory_space<vmem>>, %arg4: memref<10x32xbf16, #tpu.memory_space<vmem>>, %arg5: memref<1x32xf32, #tpu.memory_space<vmem>>, %arg6: memref<32x32xbf16, #tpu.memory_space<vmem>>, %arg7: memref<1x32xf32, #tpu.memory_space<vmem>>, %arg8: memref<32x128xbf16, #tpu.memory_space<vmem>>, %arg9: memref<1x128xf32, #tpu.memory_space<vmem>>, %arg10: memref<16x128xf32, #tpu.memory_space<vmem>>) attributes {dimension_semantics = [#tpu.dimension_semantics<parallel>], iteration_bounds = array<i64: 1>, scalar_prefetch = 0 : i64, scratch_operands = 0 : i64, tpu.core_type = #tpu.core_type<tc>, window_params = [{transform_indices = @transform_0, window_bounds = array<i64: 16, 5>}, {transform_indices = @transform_1, window_bounds = array<i64: 16, 10>}, {pipeline_mode = #tpu.pipeline_mode<synchronous>, transform_indices = @transform_2, window_bounds = array<i64: 5, 32>}, {pipeline_mode = #tpu.pipeline_mode<synchronous>, transform_indices = @transform_3, window_bounds = array<i64: 10, 32>}, {pipeline_mode = #tpu.pipeline_mode<synchronous>, transform_indices = @transform_4, window_bounds = array<i64: 1, 32>}, {pipeline_mode = #tpu.pipeline_mode<synchronous>, transform_indices = @transform_5, window_bounds = array<i64: 32, 32>}, {pipeline_mode = #tpu.pipeline_mode<synchronous>, transform_indices = @transform_6, window_bounds = array<i64: 1, 32>}, {pipeline_mode = #tpu.pipeline_mode<synchronous>, transform_indices = @transform_7, window_bounds = array<i64: 32, 128>}, {pipeline_mode = #tpu.pipeline_mode<synchronous>, transform_indices = @transform_8, window_bounds = array<i64: 1, 128>}, {transform_indices = @transform_9, window_bounds = array<i64: 16, 128>}]} {
    %c0 = arith.constant 0 : index
    %c0_0 = arith.constant 0 : index
    %0 = vector.load %arg1[%c0, %c0_0] : memref<16x5xf32, #tpu.memory_space<vmem>>, vector<16x5xf32>
    %1 = arith.truncf %0 : vector<16x5xf32> to vector<16x5xbf16>
    %c0_1 = arith.constant 0 : index
    %c0_2 = arith.constant 0 : index
    %2 = vector.load %arg2[%c0_1, %c0_2] : memref<16x10xf32, #tpu.memory_space<vmem>>, vector<16x10xf32>
    %3 = arith.truncf %2 : vector<16x10xf32> to vector<16x10xbf16>
    %c0_3 = arith.constant 0 : index
    %c0_4 = arith.constant 0 : index
    %4 = vector.load %arg3[%c0_3, %c0_4] : memref<5x32xbf16, #tpu.memory_space<vmem>>, vector<5x32xbf16>
    %cst = arith.constant dense<0.000000e+00> : vector<16x32xf32>
    %5 = tpu.matmul %1, %4, %cst {dimension_numbers = #tpu.dot_dimension_numbers<[1], [0], [0], [1], [0, 0, 1, 1], [], []>} : vector<16x5xbf16>, vector<5x32xbf16>, vector<16x32xf32> -> vector<16x32xf32>
    %c0_5 = arith.constant 0 : index
    %c0_6 = arith.constant 0 : index
    %6 = vector.load %arg4[%c0_5, %c0_6] : memref<10x32xbf16, #tpu.memory_space<vmem>>, vector<10x32xbf16>
    %cst_7 = arith.constant dense<0.000000e+00> : vector<16x32xf32>
    %7 = tpu.matmul %3, %6, %cst_7 {dimension_numbers = #tpu.dot_dimension_numbers<[1], [0], [0], [1], [0, 0, 1, 1], [], []>} : vector<16x10xbf16>, vector<10x32xbf16>, vector<16x32xf32> -> vector<16x32xf32>
    %8 = arith.addf %5, %7 : vector<16x32xf32>
    %c0_8 = arith.constant 0 : index
    %c0_9 = arith.constant 0 : index
    %9 = vector.load %arg5[%c0_8, %c0_9] : memref<1x32xf32, #tpu.memory_space<vmem>>, vector<1x32xf32>
    %10 = vector.broadcast %9 : vector<1x32xf32> to vector<16x32xf32>
    %11 = arith.addf %8, %10 : vector<16x32xf32>
    %cst_10 = arith.constant 0.000000e+00 : f32
    %12 = vector.broadcast %cst_10 : f32 to vector<16x32xf32>
    %13 = arith.maximumf %11, %12 : vector<16x32xf32>
    %14 = arith.truncf %13 : vector<16x32xf32> to vector<16x32xbf16>
    %c0_11 = arith.constant 0 : index
    %c0_12 = arith.constant 0 : index
    %15 = vector.load %arg6[%c0_11, %c0_12] : memref<32x32xbf16, #tpu.memory_space<vmem>>, vector<32x32xbf16>
    %cst_13 = arith.constant dense<0.000000e+00> : vector<16x32xf32>
    %16 = tpu.matmul %14, %15, %cst_13 {dimension_numbers = #tpu.dot_dimension_numbers<[1], [0], [0], [1], [0, 0, 1, 1], [], []>} : vector<16x32xbf16>, vector<32x32xbf16>, vector<16x32xf32> -> vector<16x32xf32>
    %c0_14 = arith.constant 0 : index
    %c0_15 = arith.constant 0 : index
    %17 = vector.load %arg7[%c0_14, %c0_15] : memref<1x32xf32, #tpu.memory_space<vmem>>, vector<1x32xf32>
    %18 = vector.broadcast %17 : vector<1x32xf32> to vector<16x32xf32>
    %19 = arith.addf %16, %18 : vector<16x32xf32>
    %cst_16 = arith.constant 0.000000e+00 : f32
    %20 = vector.broadcast %cst_16 : f32 to vector<16x32xf32>
    %21 = arith.maximumf %19, %20 : vector<16x32xf32>
    %22 = arith.truncf %21 : vector<16x32xf32> to vector<16x32xbf16>
    %c0_17 = arith.constant 0 : index
    %c0_18 = arith.constant 0 : index
    %23 = vector.load %arg8[%c0_17, %c0_18] : memref<32x128xbf16, #tpu.memory_space<vmem>>, vector<32x128xbf16>
    %cst_19 = arith.constant dense<0.000000e+00> : vector<16x128xf32>
    %24 = tpu.matmul %22, %23, %cst_19 {dimension_numbers = #tpu.dot_dimension_numbers<[1], [0], [0], [1], [0, 0, 1, 1], [], []>} : vector<16x32xbf16>, vector<32x128xbf16>, vector<16x128xf32> -> vector<16x128xf32>
    %c0_20 = arith.constant 0 : index
    %c0_21 = arith.constant 0 : index
    %25 = vector.load %arg9[%c0_20, %c0_21] : memref<1x128xf32, #tpu.memory_space<vmem>>, vector<1x128xf32>
    %26 = vector.broadcast %25 : vector<1x128xf32> to vector<16x128xf32>
    %27 = arith.addf %24, %26 : vector<16x128xf32>
    %c0_22 = arith.constant 0 : index
    %c0_23 = arith.constant 0 : index
    %28 = vector.load %arg10[%c0_22, %c0_23] : memref<16x128xf32, #tpu.memory_space<vmem>>, vector<16x128xf32>
    tpu.vector_store %arg10[%c0_22, %c0_23], %27 {strides = array<i32>} : memref<16x128xf32, #tpu.memory_space<vmem>>, vector<16x128xf32>,
    return
  }
  func.func @transform_0(%arg0: i32) -> (i32, i32) {
    %c0_i32 = arith.constant 0 : i32
    %c0_i32_0 = arith.constant 0 : i32
    return %arg0, %c0_i32 : i32, i32
  }
  func.func @transform_1(%arg0: i32) -> (i32, i32) {
    %c0_i32 = arith.constant 0 : i32
    %c0_i32_0 = arith.constant 0 : i32
    return %arg0, %c0_i32 : i32, i32
  }
  func.func @transform_2(%arg0: i32) -> (i32, i32) {
    %c0_i32 = arith.constant 0 : i32
    %c0_i32_0 = arith.constant 0 : i32
    %c0_i32_1 = arith.constant 0 : i32
    return %c0_i32, %c0_i32_0 : i32, i32
  }
  func.func @transform_3(%arg0: i32) -> (i32, i32) {
    %c0_i32 = arith.constant 0 : i32
    %c0_i32_0 = arith.constant 0 : i32
    %c0_i32_1 = arith.constant 0 : i32
    return %c0_i32, %c0_i32_0 : i32, i32
  }
  func.func @transform_4(%arg0: i32) -> (i32, i32) {
    %c0_i32 = arith.constant 0 : i32
    %c0_i32_0 = arith.constant 0 : i32
    %c0_i32_1 = arith.constant 0 : i32
    return %c0_i32, %c0_i32_0 : i32, i32
  }
  func.func @transform_5(%arg0: i32) -> (i32, i32) {
    %c0_i32 = arith.constant 0 : i32
    %c0_i32_0 = arith.constant 0 : i32
    %c0_i32_1 = arith.constant 0 : i32
    return %c0_i32, %c0_i32_0 : i32, i32
  }
  func.func @transform_6(%arg0: i32) -> (i32, i32) {
    %c0_i32 = arith.constant 0 : i32
    %c0_i32_0 = arith.constant 0 : i32
    %c0_i32_1 = arith.constant 0 : i32
    return %c0_i32, %c0_i32_0 : i32, i32
  }
  func.func @transform_7(%arg0: i32) -> (i32, i32) {
    %c0_i32 = arith.constant 0 : i32
    %c0_i32_0 = arith.constant 0 : i32
    %c0_i32_1 = arith.constant 0 : i32
    return %c0_i32, %c0_i32_0 : i32, i32
  }
  func.func @transform_8(%arg0: i32) -> (i32, i32) {
    %c0_i32 = arith.constant 0 : i32
    %c0_i32_0 = arith.constant 0 : i32
    %c0_i32_1 = arith.constant 0 : i32
    return %c0_i32, %c0_i32_0 : i32, i32
  }
  func.func @transform_9(%arg0: i32) -> (i32, i32) {
    %c0_i32 = arith.constant 0 : i32
    %c0_i32_0 = arith.constant 0 : i32
    return %arg0, %c0_i32 : i32, i32
  }
}

</mosaic_0001>

<llo_original>
// kernel: _forward_2d.1
$region0: #{_forward_2d.1}
  #allocation0 [shape = 'u32[]', space=smem, size = 0x4, offset = 0x4, fixed_abs, tag = 'smem constant byte address 0x4 - core index']
  #allocation1 [shape = 'u32[72,128]{1,0:T(1,128)}', space=vmem, size = 0x9000, scoped, tag = 'internal scratch']
  %s0 = inlined_call_operand.vmem [shape: f32[16,5], index: 0, kind: input, shape index: {}]
  %s1 = inlined_call_operand.vmem [shape: f32[16,10], index: 1, kind: input, shape index: {}]
  %s2 = inlined_call_operand.vmem [shape: bf16[5,32], index: 2, kind: input, shape index: {}]
  %s3 = inlined_call_operand.vmem [shape: bf16[10,32], index: 3, kind: input, shape index: {}]
  %s4 = inlined_call_operand.hbm [shape: f32[1,32], index: 4, kind: input, shape index: {}]
  %s5 = inlined_call_operand.hbm [shape: bf16[32,32], index: 5, kind: input, shape index: {}]
  %s6 = inlined_call_operand.hbm [shape: f32[1,32], index: 6, kind: input, shape index: {}]
  %s7 = inlined_call_operand.hbm [shape: bf16[32,128], index: 7, kind: input, shape index: {}]
  %s8 = inlined_call_operand.vmem [shape: f32[1,128], index: 8, kind: input, shape index: {}]
  %s9 = inlined_call_operand.hbm [shape: f32[16,128], index: 9, kind: output, shape index: {}]
  %s10 = sld [smem:[#allocation0]]
  $region62: #{_forward_2d.1} parent=0
    _
  %s12 = ssub.s32 1, %s10
  %s13 = scalar_select 0, %s12, %s10
  $region1: #{_forward_2d.1} parent=0
    #allocation2 [shape = 'u8[512]{0}', space=vmem, size = 0x400, scoped, tag = 'input window, operand 4, single buffered']
    #allocation3 [shape = 's32[1]{0}', space=sflag, size = 0x4, scoped, tag = 'scoped memory for _forward_2d.1']
    #allocation4 [shape = 's32[1]{0}', space=sflag, size = 0x4, scoped, tag = 'scoped memory for _forward_2d.1']
    #allocation5 [shape = 'u8[8192]{0}', space=vmem, size = 0x2000, scoped, tag = 'input window, operand 5, single buffered']
    #allocation6 [shape = 's32[1]{0}', space=sflag, size = 0x4, scoped, tag = 'scoped memory for _forward_2d.1']
    #allocation7 [shape = 'u8[512]{0}', space=vmem, size = 0x400, scoped, tag = 'input window, operand 6, single buffered']
    #allocation8 [shape = 'u8[8192]{0}', space=vmem, size = 0x2000, scoped, tag = 'input window, operand 7, single buffered']
    #allocation9 [shape = 's32[1]{0}', space=sflag, size = 0x4, scoped, tag = 'scoped memory for _forward_2d.1']
    #allocation10 [shape = 'u8[8192]{0}', space=vmem, size = 0x2000, scoped, tag = 'output window, operand 0, single buffered']
    %14 = vsyncpa [#allocation3], 0
    %15 = vsyncpa [#allocation6], 0
    %16 = vsyncpa [#allocation9], 0
    %17 = vsyncpa [#allocation4], 0
    // Predicated region
    $region2: #{_forward_2d.1} parent=1 // pred_check
      _
    $region3: #{_forward_2d.1} parent=1 // pred_check_branch
      %19 = sbr.rel (0) target = $region5
    $region4: #{_forward_2d.1} parent=1 // pred_region
      _
    $region5: #{_forward_2d.1} parent=1 // pred_fallthru
      _
    // Predicated region
    $region6: #{_forward_2d.1} parent=1 // pred_check
      _
    $region7: #{_forward_2d.1} parent=1 // pred_check_branch
      %21 = sbr.rel (0) target = $region9
    $region8: #{_forward_2d.1} parent=1 // pred_region
      _
    $region9: #{_forward_2d.1} parent=1 // pred_fallthru
      _
    // Predicated region
    $region10: #{_forward_2d.1} parent=1 // pred_check
      _
    $region11: #{_forward_2d.1} parent=1 // pred_check_branch
      %23 = sbr.rel (0) target = $region13
    $region12: #{_forward_2d.1} parent=1 // pred_region
      _
    $region13: #{_forward_2d.1} parent=1 // pred_fallthru
      _
    // Predicated region
    $region14: #{_forward_2d.1} parent=1 // pred_check
      _
    $region15: #{_forward_2d.1} parent=1 // pred_check_branch
      %25 = sbr.rel (0) target = $region17
    $region16: #{_forward_2d.1} parent=1 // pred_region
      _
    $region17: #{_forward_2d.1} parent=1 // pred_fallthru
      _
    // Predicated region
    $region18: #{_forward_2d.1} parent=1 // pred_check
      _
    $region19: #{_forward_2d.1} parent=1 // pred_check_branch
      %27 = sbr.rel (0) target = $region21
    $region20: #{_forward_2d.1} parent=1 // pred_region
      %29 = vsyncadd [#allocation3], 0
      %s31 = sshll.u32 %s4, 4
      %s32 = int_to_ptr.hbm [resolvable:$true] %s31
      %s33 = sshll.u32 [#allocation2], 4
      %s34 = int_to_ptr.vmem [resolvable:$true] %s33
      %36 = dma.hbm_to_vmem [thread:$0]  %s32, 16, %s34, [#allocation3]
    $region21: #{_forward_2d.1} parent=1 // pred_fallthru
      _
    // Predicated region
    $region22: #{_forward_2d.1} parent=1 // pred_check
      _
    $region23: #{_forward_2d.1} parent=1 // pred_check_branch
      %38 = sbr.rel (0) target = $region25
    $region24: #{_forward_2d.1} parent=1 // pred_region
      %40 = vsyncadd [#allocation6], 0
      %s41 = sshll.u32 %s5, 4
      %s42 = int_to_ptr.hbm [resolvable:$true] %s41
      %s43 = sshll.u32 [#allocation5], 4
      %s44 = int_to_ptr.vmem [resolvable:$true] %s43
      %49 = dma.hbm_to_vmem [thread:$0]  %s42, 256, %s44, [#allocation6], 64, 64, 4
    $region25: #{_forward_2d.1} parent=1 // pred_fallthru
      _
    // Predicated region
    $region26: #{_forward_2d.1} parent=1 // pred_check
      _
    $region27: #{_forward_2d.1} parent=1 // pred_check_branch
      %51 = sbr.rel (0) target = $region29
    $region28: #{_forward_2d.1} parent=1 // pred_region
      %53 = vsyncadd [#allocation6], 0
      %s55 = sshll.u32 %s6, 4
      %s56 = int_to_ptr.hbm [resolvable:$true] %s55
      %s57 = sshll.u32 [#allocation7], 4
      %s58 = int_to_ptr.vmem [resolvable:$true] %s57
      %60 = dma.hbm_to_vmem [thread:$0]  %s56, 16, %s58, [#allocation6]
    $region29: #{_forward_2d.1} parent=1 // pred_fallthru
      _
    // Predicated region
    $region30: #{_forward_2d.1} parent=1 // pred_check
      _
    $region31: #{_forward_2d.1} parent=1 // pred_check_branch
      %62 = sbr.rel (0) target = $region33
    $region32: #{_forward_2d.1} parent=1 // pred_region
      %64 = vsyncadd [#allocation9], 0
      %s65 = sshll.u32 %s7, 4
      %s66 = int_to_ptr.hbm [resolvable:$true] %s65
      %s67 = sshll.u32 [#allocation8], 4
      %s68 = int_to_ptr.vmem [resolvable:$true] %s67
      %73 = dma.hbm_to_vmem [thread:$0]  %s66, 256, %s68, [#allocation9], 64, 64, 4
    $region33: #{_forward_2d.1} parent=1 // pred_fallthru
      _
    // Predicated region
    $region34: #{_forward_2d.1} parent=1 // pred_check
      _
    $region35: #{_forward_2d.1} parent=1 // pred_check_branch
      %75 = sbr.rel (0) target = $region37
    $region36: #{_forward_2d.1} parent=1 // pred_region
      _
    $region37: #{_forward_2d.1} parent=1 // pred_fallthru
      _
    // Predicated region
    $region38: #{_forward_2d.1} parent=1 // pred_check
      _
    $region39: #{_forward_2d.1} parent=1 // pred_check_branch
      %77 = sbr.rel (0) target = $region41
    $region40: #{_forward_2d.1} parent=1 // pred_region
      %79 = dma.done [#allocation3], 16
    $region41: #{_forward_2d.1} parent=1 // pred_fallthru
      _
    // Predicated region
    $region42: #{_forward_2d.1} parent=1 // pred_check
      _
    $region43: #{_forward_2d.1} parent=1 // pred_check_branch
      %81 = sbr.rel (0) target = $region45
    $region44: #{_forward_2d.1} parent=1 // pred_region
      %83 = dma.done [#allocation6], 256
    $region45: #{_forward_2d.1} parent=1 // pred_fallthru
      _
    // Predicated region
    $region46: #{_forward_2d.1} parent=1 // pred_check
      _
    $region47: #{_forward_2d.1} parent=1 // pred_check_branch
      %85 = sbr.rel (0) target = $region49
    $region48: #{_forward_2d.1} parent=1 // pred_region
      %87 = dma.done [#allocation6], 16
    $region49: #{_forward_2d.1} parent=1 // pred_fallthru
      _
    // Predicated region
    $region50: #{_forward_2d.1} parent=1 // pred_check
      _
    $region51: #{_forward_2d.1} parent=1 // pred_check_branch
      %89 = sbr.rel (0) target = $region53
    $region52: #{_forward_2d.1} parent=1 // pred_region
      %91 = dma.done [#allocation9], 256
    $region53: #{_forward_2d.1} parent=1 // pred_fallthru
      _
    %v93 = vld [vmem:[%s0] sm:$0xff]
    %v94 = vld [vmem:[%s0 + $0x8] sm:$0xff]
    %v95 = vpack.c.bf16 %v94, %v93
    %v96 = vld [vmem:[%s1] sm:$0xff]
    %v97 = vld [vmem:[%s1 + $0x8] sm:$0xff]
    %v98 = vpack.c.bf16 %v97, %v96
    %v99 = vld [vmem:[%s2] sm:$0x7]
    %v100 = vld [vmem:[%s3] sm:$0xf]
    %v101 = vld [vmem:[%s3 + $0x4] sm:$0x1]
    %v104 = vunpack.c.l.b16 %v100
    %v105 = vunpack.c.l.b16 %v101
    %v106 = vpack.c.b16 %v105, %v104
    %vm107 = vcmask 80896
    %v109 = vsel %vm107, %v98, 0
    %vm111 = vcmask 1044480
    %v113 = vsel %vm111, %v106, 0
    %115 = vmatpush.bf16.msra.mxu0 0
    %116 = vmatpush.bf16.msra.mxu0 0
    %117 = vmatpush.bf16.msra.mxu0 0
    %118 = vmatpush.bf16.msra.mxu0 0
    %119 = vmatpush.bf16.msra.mxu0 0
    %120 = vmatpush.bf16.msra.mxu0 0
    %121 = vmatpush.bf16.msra.mxu0 0
    %122 = vmatpush.bf16.msra.mxu0 %v113
    %123 = vmatmul.bf16.gmra.mxu0 %v109
    %v124 = vpop.f32.mrf.mxu0
    %v125 = vadd.f32 0.0, %v124
    %v126 = vpop.f32.mrf.mxu0
    %v127 = vadd.f32 0.0, %v126
    %128 = vdwg.mxu0
    %vm129 = vcmask 39936
    %v131 = vsel %vm129, %v95, 0
    %vm133 = vcmask 1041408
    %vm134 = vcmask 1042432
    %v135 = vsel %vm133, 4294967295, 65535
    %v136 = vsel %vm134, %v135, 0
    %v138 = vand.u32 %v99, %v136
    %140 = vmatpush.bf16.msra.mxu0 0
    %141 = vmatpush.bf16.msra.mxu0 0
    %142 = vmatpush.bf16.msra.mxu0 0
    %143 = vmatpush.bf16.msra.mxu0 0
    %144 = vmatpush.bf16.msra.mxu0 0
    %145 = vmatpush.bf16.msra.mxu0 0
    %146 = vmatpush.bf16.msra.mxu0 0
    %147 = vmatpush.bf16.msra.mxu0 %v138
    %148 = vmatmul.bf16.gmra.mxu0 %v131
    %v149 = vpop.f32.mrf.mxu0
    %v150 = vadd.f32 %v125, %v149
    %v151 = vpop.f32.mrf.mxu0
    %v152 = vadd.f32 %v127, %v151
    %153 = vdwg.mxu0
    %v154 = vld [vmem:[#allocation2] sm:$0x1]
    %v156 = vperm.slane %v154, 0
    %v158 = vadd.f32 %v150, %v156
    %v159 = vadd.f32 %v152, %v156
    %v160 = vmax.f32 %v158, 0.0
    %v161 = vmax.f32 %v159, 0.0
    %v162 = vpack.c.bf16 %v161, %v160
    %v163 = vld [vmem:[#allocation5] sm:$0xf]
    %v164 = vld [vmem:[#allocation5 + $0x4] sm:$0xf]
    %v165 = vld [vmem:[#allocation5 + $0x8] sm:$0xf]
    %v166 = vld [vmem:[#allocation5 + $0xc] sm:$0xf]
    %v167 = vld [vmem:[#allocation7] sm:$0x1]
    %v169 = vperm.slane %v167, 0
    %v175 = vunpack.c.l.b16 %v163
    %v176 = vunpack.c.l.b16 %v164
    %v177 = vunpack.c.l.b16 %v165
    %v178 = vunpack.c.l.b16 %v166
    %v179 = vpack.c.b16 %v176, %v175
    %v180 = vpack.c.b16 %v178, %v177
    %vm183 = vcmask 261120
    %v185 = vsel %vm183, %v162, 0
    %187 = vmatpush.bf16.msra.mxu0 0
    %188 = vmatpush.bf16.msra.mxu0 0
    %189 = vmatpush.bf16.msra.mxu0 0
    %190 = vmatpush.bf16.msra.mxu0 0
    %191 = vmatpush.bf16.msra.mxu0 0
    %192 = vmatpush.bf16.msra.mxu0 0
    %193 = vmatpush.bf16.msra.mxu0 %v180
    %194 = vmatpush.bf16.msra.mxu0 %v179
    %195 = vmatmul.bf16.gmra.mxu0 %v185
    %v196 = vpop.f32.mrf.mxu0
    %v197 = vadd.f32 %v169, %v196
    %v198 = vpop.f32.mrf.mxu0
    %v199 = vadd.f32 %v169, %v198
    %200 = vdwg.mxu0
    %v201 = vmax.f32 %v197, 0.0
    %v202 = vmax.f32 %v199, 0.0
    %v203 = vpack.c.bf16 %v202, %v201
    %v204 = vld [vmem:[#allocation8] sm:$0xf]
    %v205 = vld [vmem:[#allocation8 + $0x4] sm:$0xf]
    %v206 = vld [vmem:[#allocation8 + $0x8] sm:$0xf]
    %v207 = vld [vmem:[#allocation8 + $0xc] sm:$0xf]
    %v208 = vld [vmem:[%s8] sm:$0x1]
    %v210 = vperm.slane %v208, 0
    %v216 = vunpack.c.l.b16 %v204
    %v217 = vunpack.c.l.b16 %v205
    %v218 = vunpack.c.l.b16 %v206
    %v219 = vunpack.c.l.b16 %v207
    %v220 = vpack.c.b16 %v217, %v216
    %v221 = vpack.c.b16 %v219, %v218
    %v225 = vsel %vm183, %v203, 0
    %227 = vmatpush.bf16.msra.mxu0 0
    %228 = vmatpush.bf16.msra.mxu0 0
    %229 = vmatpush.bf16.msra.mxu0 0
    %230 = vmatpush.bf16.msra.mxu0 0
    %231 = vmatpush.bf16.msra.mxu0 0
    %232 = vmatpush.bf16.msra.mxu0 0
    %233 = vmatpush.bf16.msra.mxu0 %v221
    %234 = vmatpush.bf16.msra.mxu0 %v220
    %235 = vmatmul.bf16.gmra.mxu0 %v225
    %v236 = vpop.f32.mrf.mxu0
    %v237 = vadd.f32 %v210, %v236
    %v238 = vpop.f32.mrf.mxu0
    %v239 = vadd.f32 %v210, %v238
    %240 = vdwg.mxu0
    %241 = vst [vmem:[#allocation10] sm:$0xff] %v237
    %242 = vst [vmem:[#allocation10 + $0x8] sm:$0xff] %v239
    // Predicated region
    $region54: #{_forward_2d.1} parent=1 // pred_check
      _
    $region55: #{_forward_2d.1} parent=1 // pred_check_branch
      %244 = sbr.rel (0) target = $region57
    $region56: #{_forward_2d.1} parent=1 // pred_region
      %246 = vsyncadd [#allocation4], 0
      %s247 = sshll.u32 [#allocation10], 4
      %s248 = int_to_ptr.vmem [resolvable:$true] %s247
      %s249 = sshll.u32 %s9, 4
      %s250 = int_to_ptr.hbm [resolvable:$true] %s249
      %255 = dma.vmem_to_hbm [thread:$0]  %s248, 256, %s250, [#allocation4], 128, 128, 8
    $region57: #{_forward_2d.1} parent=1 // pred_fallthru
      _
    // Predicated region
    $region58: #{_forward_2d.1} parent=1 // pred_check
      _
    $region59: #{_forward_2d.1} parent=1 // pred_check_branch
      %257 = sbr.rel (0) target = $region61
    $region60: #{_forward_2d.1} parent=1 // pred_region
      %259 = dma.done [#allocation4], 256
    $region61: #{_forward_2d.1} parent=1 // pred_fallthru
      _
    %260 = vsyncpa [#allocation3], 1
    %261 = vsyncpa [#allocation6], 1
    %262 = vsyncpa [#allocation9], 1
    %263 = vsyncpa [#allocation4], 1

// kernel: _forward_2d.1
$region0: #{_forward_2d.1}
  #allocation0 [shape = 'u32[]', space=smem, size = 0x4, offset = 0x4, fixed_abs, tag = 'smem constant byte address 0x4 - core index']
  #allocation1 [shape = 'u32[72,128]{1,0:T(1,128)}', space=vmem, size = 0x9000, scoped, tag = 'internal scratch']
  %s0 = inlined_call_operand.vmem [shape: f32[16,5], index: 0, kind: input, shape index: {}]
  %s1 = inlined_call_operand.vmem [shape: f32[16,10], index: 1, kind: input, shape index: {}]
  %s2 = inlined_call_operand.vmem [shape: bf16[5,32], index: 2, kind: input, shape index: {}]
  %s3 = inlined_call_operand.vmem [shape: bf16[10,32], index: 3, kind: input, shape index: {}]
  %s4 = inlined_call_operand.hbm [shape: f32[1,32], index: 4, kind: input, shape index: {}]
  %s5 = inlined_call_operand.hbm [shape: bf16[32,32], index: 5, kind: input, shape index: {}]
  %s6 = inlined_call_operand.hbm [shape: f32[1,32], index: 6, kind: input, shape index: {}]
  %s7 = inlined_call_operand.hbm [shape: bf16[32,128], index: 7, kind: input, shape index: {}]
  %s8 = inlined_call_operand.vmem [shape: f32[1,128], index: 8, kind: input, shape index: {}]
  %s9 = inlined_call_operand.hbm [shape: f32[16,128], index: 9, kind: output, shape index: {}]
  %s10 = sld [smem:[#allocation0]]
  $region62: #{_forward_2d.1} parent=0
    _
  %s12 = ssub.s32 1, %s10
  %s13 = scalar_select 0, %s12, %s10
  $region1: #{_forward_2d.1} parent=0
    #allocation2 [shape = 'u8[512]{0}', space=vmem, size = 0x400, scoped, tag = 'input window, operand 4, single buffered']
    #allocation3 [shape = 's32[1]{0}', space=sflag, size = 0x4, scoped, tag = 'scoped memory for _forward_2d.1']
    #allocation4 [shape = 's32[1]{0}', space=sflag, size = 0x4, scoped, tag = 'scoped memory for _forward_2d.1']
    #allocation5 [shape = 'u8[8192]{0}', space=vmem, size = 0x2000, scoped, tag = 'input window, operand 5, single buffered']
    #allocation6 [shape = 's32[1]{0}', space=sflag, size = 0x4, scoped, tag = 'scoped memory for _forward_2d.1']
    #allocation7 [shape = 'u8[512]{0}', space=vmem, size = 0x400, scoped, tag = 'input window, operand 6, single buffered']
    #allocation8 [shape = 'u8[8192]{0}', space=vmem, size = 0x2000, scoped, tag = 'input window, operand 7, single buffered']
    #allocation9 [shape = 's32[1]{0}', space=sflag, size = 0x4, scoped, tag = 'scoped memory for _forward_2d.1']
    #allocation10 [shape = 'u8[8192]{0}', space=vmem, size = 0x2000, scoped, tag = 'output window, operand 0, single buffered']
    %14 = vsyncpa [#allocation3], 0
    %15 = vsyncpa [#allocation6], 0
    %16 = vsyncpa [#allocation9], 0
    %17 = vsyncpa [#allocation4], 0
    // Predicated region
    $region2: #{_forward_2d.1} parent=1 // pred_check
      _
    $region3: #{_forward_2d.1} parent=1 // pred_check_branch
      %19 = sbr.rel (0) target = $region5
    $region4: #{_forward_2d.1} parent=1 // pred_region
      _
    $region5: #{_forward_2d.1} parent=1 // pred_fallthru
      _
    // Predicated region
    $region6: #{_forward_2d.1} parent=1 // pred_check
      _
    $region7: #{_forward_2d.1} parent=1 // pred_check_branch
      %21 = sbr.rel (0) target = $region9
    $region8: #{_forward_2d.1} parent=1 // pred_region
      _
    $region9: #{_forward_2d.1} parent=1 // pred_fallthru
      _
    // Predicated region
    $region10: #{_forward_2d.1} parent=1 // pred_check
      _
    $region11: #{_forward_2d.1} parent=1 // pred_check_branch
      %23 = sbr.rel (0) target = $region13
    $region12: #{_forward_2d.1} parent=1 // pred_region
      _
    $region13: #{_forward_2d.1} parent=1 // pred_fallthru
      _
    // Predicated region
    $region14: #{_forward_2d.1} parent=1 // pred_check
      _
    $region15: #{_forward_2d.1} parent=1 // pred_check_branch
      %25 = sbr.rel (0) target = $region17
    $region16: #{_forward_2d.1} parent=1 // pred_region
      _
    $region17: #{_forward_2d.1} parent=1 // pred_fallthru
      _
    // Predicated region
    $region18: #{_forward_2d.1} parent=1 // pred_check
      _
    $region19: #{_forward_2d.1} parent=1 // pred_check_branch
      %27 = sbr.rel (0) target = $region21
    $region20: #{_forward_2d.1} parent=1 // pred_region
      %29 = vsyncadd [#allocation3], 0
      %s31 = sshll.u32 %s4, 4
      %s32 = int_to_ptr.hbm [resolvable:$true] %s31
      %s33 = sshll.u32 [#allocation2], 4
      %s34 = int_to_ptr.vmem [resolvable:$true] %s33
      %36 = dma.hbm_to_vmem [thread:$0]  %s32, 16, %s34, [#allocation3]
    $region21: #{_forward_2d.1} parent=1 // pred_fallthru
      _
    // Predicated region
    $region22: #{_forward_2d.1} parent=1 // pred_check
      _
    $region23: #{_forward_2d.1} parent=1 // pred_check_branch
      %38 = sbr.rel (0) target = $region25
    $region24: #{_forward_2d.1} parent=1 // pred_region
      %40 = vsyncadd [#allocation6], 0
      %s41 = sshll.u32 %s5, 4
      %s42 = int_to_ptr.hbm [resolvable:$true] %s41
      %s43 = sshll.u32 [#allocation5], 4
      %s44 = int_to_ptr.vmem [resolvable:$true] %s43
      %49 = dma.hbm_to_vmem [thread:$0]  %s42, 256, %s44, [#allocation6], 64, 64, 4
    $region25: #{_forward_2d.1} parent=1 // pred_fallthru
      _
    // Predicated region
    $region26: #{_forward_2d.1} parent=1 // pred_check
      _
    $region27: #{_forward_2d.1} parent=1 // pred_check_branch
      %51 = sbr.rel (0) target = $region29
    $region28: #{_forward_2d.1} parent=1 // pred_region
      %53 = vsyncadd [#allocation6], 0
      %s55 = sshll.u32 %s6, 4
      %s56 = int_to_ptr.hbm [resolvable:$true] %s55
      %s57 = sshll.u32 [#allocation7], 4
      %s58 = int_to_ptr.vmem [resolvable:$true] %s57
      %60 = dma.hbm_to_vmem [thread:$0]  %s56, 16, %s58, [#allocation6]
    $region29: #{_forward_2d.1} parent=1 // pred_fallthru
      _
    // Predicated region
    $region30: #{_forward_2d.1} parent=1 // pred_check
      _
    $region31: #{_forward_2d.1} parent=1 // pred_check_branch
      %62 = sbr.rel (0) target = $region33
    $region32: #{_forward_2d.1} parent=1 // pred_region
      %64 = vsyncadd [#allocation9], 0
      %s65 = sshll.u32 %s7, 4
      %s66 = int_to_ptr.hbm [resolvable:$true] %s65
      %s67 = sshll.u32 [#allocation8], 4
      %s68 = int_to_ptr.vmem [resolvable:$true] %s67
      %73 = dma.hbm_to_vmem [thread:$0]  %s66, 256, %s68, [#allocation9], 64, 64, 4
    $region33: #{_forward_2d.1} parent=1 // pred_fallthru
      _
    // Predicated region
    $region34: #{_forward_2d.1} parent=1 // pred_check
      _
    $region35: #{_forward_2d.1} parent=1 // pred_check_branch
      %75 = sbr.rel (0) target = $region37
    $region36: #{_forward_2d.1} parent=1 // pred_region
      _
    $region37: #{_forward_2d.1} parent=1 // pred_fallthru
      _
    // Predicated region
    $region38: #{_forward_2d.1} parent=1 // pred_check
      _
    $region39: #{_forward_2d.1} parent=1 // pred_check_branch
      %77 = sbr.rel (0) target = $region41
    $region40: #{_forward_2d.1} parent=1 // pred_region
      %79 = dma.done [#allocation3], 16
    $region41: #{_forward_2d.1} parent=1 // pred_fallthru
      _
    // Predicated region
    $region42: #{_forward_2d.1} parent=1 // pred_check
      _
    $region43: #{_forward_2d.1} parent=1 // pred_check_branch
      %81 = sbr.rel (0) target = $region45
    $region44: #{_forward_2d.1} parent=1 // pred_region
      %83 = dma.done [#allocation6], 256
    $region45: #{_forward_2d.1} parent=1 // pred_fallthru
      _
    // Predicated region
    $region46: #{_forward_2d.1} parent=1 // pred_check
      _
    $region47: #{_forward_2d.1} parent=1 // pred_check_branch
      %85 = sbr.rel (0) target = $region49
    $region48: #{_forward_2d.1} parent=1 // pred_region
      %87 = dma.done [#allocation6], 16
    $region49: #{_forward_2d.1} parent=1 // pred_fallthru
      _
    // Predicated region
    $region50: #{_forward_2d.1} parent=1 // pred_check
      _
    $region51: #{_forward_2d.1} parent=1 // pred_check_branch
      %89 = sbr.rel (0) target = $region53
    $region52: #{_forward_2d.1} parent=1 // pred_region
      %91 = dma.done [#allocation9], 256
    $region53: #{_forward_2d.1} parent=1 // pred_fallthru
      _
    %v93 = vld [vmem:[%s0] sm:$0xff]
    %v94 = vld [vmem:[%s0 + $0x8] sm:$0xff]
    %v95 = vpack.c.bf16 %v94, %v93
    %v96 = vld [vmem:[%s1] sm:$0xff]
    %v97 = vld [vmem:[%s1 + $0x8] sm:$0xff]
    %v98 = vpack.c.bf16 %v97, %v96
    %v99 = vld [vmem:[%s2] sm:$0x7]
    %v100 = vld [vmem:[%s3] sm:$0xf]
    %v101 = vld [vmem:[%s3 + $0x4] sm:$0x1]
    %v104 = vunpack.c.l.b16 %v100
    %v105 = vunpack.c.l.b16 %v101
    %v106 = vpack.c.b16 %v105, %v104
    %vm107 = vcmask 80896
    %v109 = vsel %vm107, %v98, 0
    %vm111 = vcmask 1044480
    %v113 = vsel %vm111, %v106, 0
    %115 = vmatpush.bf16.msra.mxu0 0
    %116 = vmatpush.bf16.msra.mxu0 0
    %117 = vmatpush.bf16.msra.mxu0 0
    %118 = vmatpush.bf16.msra.mxu0 0
    %119 = vmatpush.bf16.msra.mxu0 0
    %120 = vmatpush.bf16.msra.mxu0 0
    %121 = vmatpush.bf16.msra.mxu0 0
    %122 = vmatpush.bf16.msra.mxu0 %v113
    %123 = vmatmul.bf16.gmra.mxu0 %v109
    %v124 = vpop.f32.mrf.mxu0
    %v125 = vadd.f32 0.0, %v124
    %v126 = vpop.f32.mrf.mxu0
    %v127 = vadd.f32 0.0, %v126
    %128 = vdwg.mxu0
    %vm129 = vcmask 39936
    %v131 = vsel %vm129, %v95, 0
    %vm133 = vcmask 1041408
    %vm134 = vcmask 1042432
    %v135 = vsel %vm133, 4294967295, 65535
    %v136 = vsel %vm134, %v135, 0
    %v138 = vand.u32 %v99, %v136
    %140 = vmatpush.bf16.msra.mxu0 0
    %141 = vmatpush.bf16.msra.mxu0 0
    %142 = vmatpush.bf16.msra.mxu0 0
    %143 = vmatpush.bf16.msra.mxu0 0
    %144 = vmatpush.bf16.msra.mxu0 0
    %145 = vmatpush.bf16.msra.mxu0 0
    %146 = vmatpush.bf16.msra.mxu0 0
    %147 = vmatpush.bf16.msra.mxu0 %v138
    %148 = vmatmul.bf16.gmra.mxu0 %v131
    %v149 = vpop.f32.mrf.mxu0
    %v150 = vadd.f32 %v125, %v149
    %v151 = vpop.f32.mrf.mxu0
    %v152 = vadd.f32 %v127, %v151
    %153 = vdwg.mxu0
    %v154 = vld [vmem:[#allocation2] sm:$0x1]
    %v156 = vperm.slane %v154, 0
    %v158 = vadd.f32 %v150, %v156
    %v159 = vadd.f32 %v152, %v156
    %v160 = vmax.f32 %v158, 0.0
    %v161 = vmax.f32 %v159, 0.0
    %v162 = vpack.c.bf16 %v161, %v160
    %v163 = vld [vmem:[#allocation5] sm:$0xf]
    %v164 = vld [vmem:[#allocation5 + $0x4] sm:$0xf]
    %v165 = vld [vmem:[#allocation5 + $0x8] sm:$0xf]
    %v166 = vld [vmem:[#allocation5 + $0xc] sm:$0xf]
    %v167 = vld [vmem:[#allocation7] sm:$0x1]
    %v169 = vperm.slane %v167, 0
    %v175 = vunpack.c.l.b16 %v163
    %v176 = vunpack.c.l.b16 %v164
    %v177 = vunpack.c.l.b16 %v165
    %v178 = vunpack.c.l.b16 %v166
    %v179 = vpack.c.b16 %v176, %v175
    %v180 = vpack.c.b16 %v178, %v177
    %vm183 = vcmask 261120
    %v185 = vsel %vm183, %v162, 0
    %187 = vmatpush.bf16.msra.mxu0 0
    %188 = vmatpush.bf16.msra.mxu0 0
    %189 = vmatpush.bf16.msra.mxu0 0
    %190 = vmatpush.bf16.msra.mxu0 0
    %191 = vmatpush.bf16.msra.mxu0 0
    %192 = vmatpush.bf16.msra.mxu0 0
    %193 = vmatpush.bf16.msra.mxu0 %v180
    %194 = vmatpush.bf16.msra.mxu0 %v179
    %195 = vmatmul.bf16.gmra.mxu0 %v185
    %v196 = vpop.f32.mrf.mxu0
    %v197 = vadd.f32 %v169, %v196
    %v198 = vpop.f32.mrf.mxu0
    %v199 = vadd.f32 %v169, %v198
    %200 = vdwg.mxu0
    %v201 = vmax.f32 %v197, 0.0
    %v202 = vmax.f32 %v199, 0.0
    %v203 = vpack.c.bf16 %v202, %v201
    %v204 = vld [vmem:[#allocation8] sm:$0xf]
    %v205 = vld [vmem:[#allocation8 + $0x4] sm:$0xf]
    %v206 = vld [vmem:[#allocation8 + $0x8] sm:$0xf]
    %v207 = vld [vmem:[#allocation8 + $0xc] sm:$0xf]
    %v208 = vld [vmem:[%s8] sm:$0x1]
    %v210 = vperm.slane %v208, 0
    %v216 = vunpack.c.l.b16 %v204
    %v217 = vunpack.c.l.b16 %v205
    %v218 = vunpack.c.l.b16 %v206
    %v219 = vunpack.c.l.b16 %v207
    %v220 = vpack.c.b16 %v217, %v216
    %v221 = vpack.c.b16 %v219, %v218
    %v225 = vsel %vm183, %v203, 0
    %227 = vmatpush.bf16.msra.mxu0 0
    %228 = vmatpush.bf16.msra.mxu0 0
    %229 = vmatpush.bf16.msra.mxu0 0
    %230 = vmatpush.bf16.msra.mxu0 0
    %231 = vmatpush.bf16.msra.mxu0 0
    %232 = vmatpush.bf16.msra.mxu0 0
    %233 = vmatpush.bf16.msra.mxu0 %v221
    %234 = vmatpush.bf16.msra.mxu0 %v220
    %235 = vmatmul.bf16.gmra.mxu0 %v225
    %v236 = vpop.f32.mrf.mxu0
    %v237 = vadd.f32 %v210, %v236
    %v238 = vpop.f32.mrf.mxu0
    %v239 = vadd.f32 %v210, %v238
    %240 = vdwg.mxu0
    %241 = vst [vmem:[#allocation10] sm:$0xff] %v237
    %242 = vst [vmem:[#allocation10 + $0x8] sm:$0xff] %v239
    // Predicated region
    $region54: #{_forward_2d.1} parent=1 // pred_check
      _
    $region55: #{_forward_2d.1} parent=1 // pred_check_branch
      %244 = sbr.rel (0) target = $region57
    $region56: #{_forward_2d.1} parent=1 // pred_region
      %246 = vsyncadd [#allocation4], 0
      %s247 = sshll.u32 [#allocation10], 4
      %s248 = int_to_ptr.vmem [resolvable:$true] %s247
      %s249 = sshll.u32 %s9, 4
      %s250 = int_to_ptr.hbm [resolvable:$true] %s249
      %255 = dma.vmem_to_hbm [thread:$0]  %s248, 256, %s250, [#allocation4], 128, 128, 8
    $region57: #{_forward_2d.1} parent=1 // pred_fallthru
      _
    // Predicated region
    $region58: #{_forward_2d.1} parent=1 // pred_check
      _
    $region59: #{_forward_2d.1} parent=1 // pred_check_branch
      %257 = sbr.rel (0) target = $region61
    $region60: #{_forward_2d.1} parent=1 // pred_region
      %259 = dma.done [#allocation4], 256
    $region61: #{_forward_2d.1} parent=1 // pred_fallthru
      _
    %260 = vsyncpa [#allocation3], 1
    %261 = vsyncpa [#allocation6], 1
    %262 = vsyncpa [#allocation9], 1
    %263 = vsyncpa [#allocation4], 1

</llo_original>
